<compile_context>
chip_gen: v7x
topology: tpu7x:2x2x1
jax: 0.10.0
libtpu: 0.0.40
codegen_flags: <defaults>
</compile_context>

<pallas_src>
import math
import functools

import jax
import jax.numpy as jnp
from jax.experimental import pallas as pl
from jax.experimental.pallas import tpu as pltpu

# jax renamed TPUCompilerParams -> CompilerParams; support both spellings.
_CompilerParams = getattr(pltpu, "CompilerParams", None) or getattr(pltpu, "TPUCompilerParams")


def _parallel_params(n_axes):
    return _CompilerParams(dimension_semantics=("parallel",) * n_axes)


# -----------------------------------------------------------------------------
# Kernels
# -----------------------------------------------------------------------------
def _minmax_kernel(x_ref, min_ref, max_ref):
    """Per-(sample, spatial-tile) min / max of the raw input."""
    xv = x_ref[...]                                        # (1, C, TW)
    min_ref[...] = jnp.broadcast_to(jnp.min(xv), min_ref.shape)
    max_ref[...] = jnp.broadcast_to(jnp.max(xv), max_ref.shape)


def _stats_kernel(x_ref, qm_ref, part_ref, *, qmax, cpt, chunk):
    """Per-(sample, spatial-tile) partial chunk statistics of the fake-quantized input.

    part_ref row 0: sum of per-chunk maxima in this tile (per channel)
             row 1: sum of per-chunk minima in this tile (per channel)
             row 2: sum of quantized values in this tile (per channel)
    """
    qm = qm_ref[...]                                       # (1, 1, 2) = [min_value, qscale]
    mn = qm[:, :, 0:1]
    qs = qm[:, :, 1:2]
    xv = x_ref[...]                                        # (1, C, TW)
    xq = jnp.round(jnp.clip((xv - mn) / qs, 0.0, qmax)) * qs + mn
    c = xv.shape[1]
    y = xq.reshape(c, cpt, chunk)                          # chunk-aligned split of the lane axis
    cmax_sum = jnp.sum(jnp.max(y, axis=-1), axis=-1)       # (C,)
    cmin_sum = jnp.sum(jnp.min(y, axis=-1), axis=-1)       # (C,)
    xq_sum = jnp.sum(y, axis=(-2, -1))                     # (C,)
    part_ref[...] = jnp.stack([cmax_sum, cmin_sum, xq_sum]).reshape(1, 1, 3, c)


def _apply_kernel(x_ref, qm_ref, par_ref, o_ref, *, qmax):
    """Re-quantize the input tile and apply the (quantized) affine normalization."""
    qm = qm_ref[...]                                       # (1, 1, 2)
    mn = qm[:, :, 0:1]
    qs = qm[:, :, 1:2]
    xv = x_ref[...]                                        # (1, C, TW)
    xq = jnp.round(jnp.clip((xv - mn) / qs, 0.0, qmax)) * qs + mn
    p = par_ref[...]                                       # (1, C, 4)
    mean = p[:, :, 0:1]
    q_scale = p[:, :, 1:2]
    q_weight = p[:, :, 2:3]
    q_bias = p[:, :, 3:4]
    # Same association order as the reference: ((x - mean) * scale) * weight + bias.
    o_ref[...] = ((xq - mean) * q_scale * q_weight + q_bias).astype(o_ref.dtype)


# -----------------------------------------------------------------------------
# Wrapper
# -----------------------------------------------------------------------------
def _fake_quantize(v, vmin, vmax, qmax):
    s = jnp.maximum((vmax - vmin) / qmax, 1e-8)
    return jnp.round(jnp.clip((v - vmin) / s, 0.0, qmax)) * s + vmin


def _pick_spatial_tile(hw, chunk, c, budget_bytes=1 << 20):
    """Largest chunk-aligned spatial tile that is lane-dense (== HW or % 128 == 0)
    and keeps a (1, C, TW) f32 block within budget_bytes."""
    cpb = hw // chunk                                      # chunks per sample
    cands = [d for d in range(1, cpb + 1)
             if cpb % d == 0 and (d * chunk == hw or (d * chunk) % 128 == 0)]
    fitting = [d for d in cands if c * d * chunk * 4 <= budget_bytes]
    cpt = max(fitting) if fitting else min(cands)
    return cpt * chunk, cpt


def range_bn_forward(x, weight, bias, *, num_chunks=16, eps=1e-5, num_bits=8,
                     momentum=0.1, running_mean=None, running_var=None,
                     running_qmin=None, running_qmax=None):
    """RangeBN forward (training mode). x: NCHW.

    Returns (out, new_running_mean, new_running_var, new_running_qmin, new_running_qmax).
    Note: as in the reference, running_var tracks the range-based *scale* (1/range),
    not a variance.
    """
    assert x.ndim == 4, "expected NCHW input"
    B, C, H, W = x.shape
    HW = H * W
    N = B * HW
    assert N % num_chunks == 0, "B*H*W must be divisible by num_chunks"
    chunk = N // num_chunks
    # Chunks of the channel-major flattening must not straddle sample boundaries for
    # the per-sample tiling below (holds for the default num_chunks=16 with the usual
    # power-of-two batch sizes).
    assert HW % chunk == 0, "H*W must be divisible by (B*H*W)//num_chunks"
    # TODO(synk): support chunk layouts that straddle sample boundaries (needs a
    # channel-major re-layout pass).
    qmax = 2.0 ** num_bits - 1.0

    x3 = x.reshape(B, C, HW).astype(jnp.float32)           # free view of NCHW
    TW, cpt = _pick_spatial_tile(HW, chunk, C)
    n_sp = HW // TW

    x_spec = pl.BlockSpec((1, C, TW), lambda b, s: (b, 0, s))

    # ---- pass 1: per-(sample, tile) min / max of the raw input -------------------
    smin_p, smax_p = pl.pallas_call(
        _minmax_kernel,
        grid=(B, n_sp),
        in_specs=[x_spec],
        out_specs=(pl.BlockSpec((1, 1, 1, 1), lambda b, s: (b, s, 0, 0)),
                   pl.BlockSpec((1, 1, 1, 1), lambda b, s: (b, s, 0, 0))),
        out_shape=(jax.ShapeDtypeStruct((B, n_sp, 1, 1), jnp.float32),
                   jax.ShapeDtypeStruct((B, n_sp, 1, 1), jnp.float32)),
        compiler_params=_parallel_params(2),
    )(x3)

    # QuantMeasure (training): mean over batch of per-sample min / max.
    min_value = jnp.min(smin_p.reshape(B, n_sp), axis=1).mean()
    max_value = jnp.max(smax_p.reshape(B, n_sp), axis=1).mean()
    qscale = jnp.maximum((max_value - min_value) / qmax, 1e-8)
    qmeta = jnp.stack([min_value, qscale]).astype(jnp.float32).reshape(1, 1, 2)
    qmeta_spec = pl.BlockSpec((1, 1, 2), lambda b, s: (0, 0, 0))

    # ---- pass 2: per-channel chunk statistics of the quantized input -------------
    parts = pl.pallas_call(
        functools.partial(_stats_kernel, qmax=qmax, cpt=cpt, chunk=chunk),
        grid=(B, n_sp),
        in_specs=[x_spec, qmeta_spec],
        out_specs=pl.BlockSpec((1, 1, 3, C), lambda b, s: (b, s, 0, 0)),
        out_shape=jax.ShapeDtypeStruct((B, n_sp, 3, C), jnp.float32),
        compiler_params=_parallel_params(2),
    )(x3, qmeta)

    totals = parts.sum(axis=(0, 1))                        # (3, C)
    mean_max = totals[0] / num_chunks
    mean_min = totals[1] / num_chunks
    mean = totals[2] / N

    scale_fix = (0.5 * 0.35 * (1 + (math.pi * math.log(4)) ** 0.5)
                 / (2 * math.log(chunk)) ** 0.5)
    scale = 1.0 / ((mean_max - mean_min) * scale_fix + eps)  # (C,)

    # quantize scale / weight / bias with their own global min/max (O(C) work).
    w = weight.reshape(C).astype(jnp.float32)
    b = bias.reshape(C).astype(jnp.float32)
    q_scale = _fake_quantize(scale, jnp.min(scale), jnp.max(scale), qmax)
    q_weight = _fake_quantize(w, jnp.min(w), jnp.max(w), qmax)
    q_bias = _fake_quantize(b, jnp.min(b), jnp.max(b), qmax)
    params = jnp.stack([mean, q_scale, q_weight, q_bias], axis=-1).reshape(1, C, 4)
    params_spec = pl.BlockSpec((1, C, 4), lambda b, s: (0, 0, 0))

    # ---- pass 3: normalize + affine, lane-dense output tiles ---------------------
    out3 = pl.pallas_call(
        functools.partial(_apply_kernel, qmax=qmax),
        grid=(B, n_sp),
        in_specs=[x_spec, qmeta_spec, params_spec],
        out_specs=pl.BlockSpec((1, C, TW), lambda b, s: (b, 0, s)),
        out_shape=jax.ShapeDtypeStruct((B, C, HW), jnp.float32),
        compiler_params=_parallel_params(2),
    )(x3, qmeta, params)
    out = out3.reshape(B, C, H, W)                         # free view back to NCHW
    # quantize_grad(out) is the identity in the forward pass.

    # ---- running-buffer updates (training-forward side effects) ------------------
    if running_mean is None:
        running_mean = jnp.zeros((C,), jnp.float32)
    if running_var is None:
        running_var = jnp.zeros((C,), jnp.float32)
    if running_qmin is None:
        running_qmin = jnp.zeros((), jnp.float32)
    if running_qmax is None:
        running_qmax = jnp.zeros((), jnp.float32)
    new_running_mean = running_mean * momentum + mean * (1.0 - momentum)
    new_running_var = running_var * momentum + scale * (1.0 - momentum)
    new_running_qmin = running_qmin * momentum + min_value * (1.0 - momentum)
    new_running_qmax = running_qmax * momentum + max_value * (1.0 - momentum)
    return out, new_running_mean, new_running_var, new_running_qmin, new_running_qmax


# -----------------------------------------------------------------------------
# Pure-JAX reference (mirrors the PyTorch forward, deterministic rounding)
# -----------------------------------------------------------------------------
def _range_bn_reference(x, weight, bias, *, num_chunks=16, eps=1e-5, num_bits=8):
    B, C, H, W = x.shape
    qmax = 2.0 ** num_bits - 1.0

    def fq(v, vmin, vmax):
        s = jnp.maximum((vmax - vmin) / qmax, 1e-8)
        return jnp.round(jnp.clip((v - vmin) / s, 0.0, qmax)) * s + vmin

    xf = x.reshape(B, -1)
    min_value = xf.min(axis=1).mean()
    max_value = xf.max(axis=1).mean()
    xq = fq(x, min_value, max_value)

    y = jnp.transpose(xq, (1, 0, 2, 3)).reshape(C, num_chunks, -1)
    mean_max = y.max(-1).mean(-1)
    mean_min = y.min(-1).mean(-1)
    mean = y.reshape(C, -1).mean(-1)
    chunk = B * H * W // num_chunks
    scale_fix = (0.5 * 0.35 * (1 + (math.pi * math.log(4)) ** 0.5)
                 / (2 * math.log(chunk)) ** 0.5)
    scale = 1.0 / ((mean_max - mean_min) * scale_fix + eps)

    q_scale = fq(scale, scale.min(), scale.max())
    q_weight = fq(weight, weight.min(), weight.max())
    q_bias = fq(bias, bias.min(), bias.max())
    out = (xq - mean[None, :, None, None]) * q_scale[None, :, None, None]
    out = out * q_weight[None, :, None, None] + q_bias[None, :, None, None]
    return out


if __name__ == "__main__":
    key = jax.random.PRNGKey(0)
    kx, kw = jax.random.split(key)

    B, C, H, W = 2, 4, 16, 16
    x = jax.random.normal(kx, (B, C, H, W), dtype=jnp.float32)
    # RangeBN.reset_params(): weight ~ U[0, 1), bias = 0.
    weight = jax.random.uniform(kw, (C,), dtype=jnp.float32)
    bias = jnp.zeros((C,), dtype=jnp.float32)

    out, rmean, rvar, rqmin, rqmax = range_bn_forward(x, weight, bias)
    jax.block_until_ready(out)
    assert out.shape == (B, C, H, W)

    ref = _range_bn_reference(x, weight, bias)
    assert jnp.allclose(out, ref, rtol=1e-3, atol=1e-3), (
        "max abs diff vs reference: %f" % float(jnp.max(jnp.abs(out - ref))))
    print("KERNEL_OK")
</pallas_src>

<mosaic_0001>
module attributes {stable_mosaic.version = 11 : i64} {
  func.func @_minmax_kernel(%arg0: i32, %arg1: i32, %arg2: memref<1x4x256xf32, #tpu.memory_space<vmem>>, %arg3: memref<1x1x1x1xf32, #tpu.memory_space<vmem>>, %arg4: memref<1x1x1x1xf32, #tpu.memory_space<vmem>>) attributes {dimension_semantics = [#tpu.dimension_semantics<parallel>, #tpu.dimension_semantics<parallel>], iteration_bounds = array<i64: 2, 1>, scalar_prefetch = 0 : i64, scratch_operands = 0 : i64, tpu.core_type = #tpu.core_type<tc>, window_params = [{transform_indices = @transform_0, window_bounds = array<i64: 1, 4, 256>}, {transform_indices = @transform_1, window_bounds = array<i64: 1, 1, 1, 1>}, {transform_indices = @transform_2, window_bounds = array<i64: 1, 1, 1, 1>}]} {
    %c0 = arith.constant 0 : index
    %c0_0 = arith.constant 0 : index
    %c0_1 = arith.constant 0 : index
    %0 = vector.load %arg2[%c0, %c0_0, %c0_1] : memref<1x4x256xf32, #tpu.memory_space<vmem>>, vector<1x4x256xf32>
    %1 = vector.shape_cast %0 : vector<1x4x256xf32> to vector<1x1x4x256xf32>
    %cst = arith.constant dense<0x7F800000> : vector<1xf32>
    %2 = vector.multi_reduction <minimumf>, %1, %cst [1, 2, 3] : vector<1x1x4x256xf32> to vector<1xf32>
    %3 = vector.shape_cast %2 : vector<1xf32> to vector<1x1x1x1xf32>
    %4 = vector.extract %3[0, 0, 0, 0] : f32 from vector<1x1x1x1xf32>
    %5 = vector.broadcast %4 : f32 to vector<1x1x1x1xf32>
    %c0_2 = arith.constant 0 : index
    %c0_3 = arith.constant 0 : index
    %c0_4 = arith.constant 0 : index
    %c0_5 = arith.constant 0 : index
    %6 = vector.load %arg3[%c0_2, %c0_3, %c0_4, %c0_5] : memref<1x1x1x1xf32, #tpu.memory_space<vmem>>, vector<1x1x1x1xf32>
    tpu.vector_store %arg3[%c0_2, %c0_3, %c0_4, %c0_5], %5 {strides = array<i32>} : memref<1x1x1x1xf32, #tpu.memory_space<vmem>>, vector<1x1x1x1xf32>,
    %7 = vector.shape_cast %0 : vector<1x4x256xf32> to vector<1x1x4x256xf32>
    %cst_6 = arith.constant dense<0xFF800000> : vector<1xf32>
    %8 = vector.multi_reduction <maximumf>, %7, %cst_6 [1, 2, 3] : vector<1x1x4x256xf32> to vector<1xf32>
    %9 = vector.shape_cast %8 : vector<1xf32> to vector<1x1x1x1xf32>
    %10 = vector.extract %9[0, 0, 0, 0] : f32 from vector<1x1x1x1xf32>
    %11 = vector.broadcast %10 : f32 to vector<1x1x1x1xf32>
    %c0_7 = arith.constant 0 : index
    %c0_8 = arith.constant 0 : index
    %c0_9 = arith.constant 0 : index
    %c0_10 = arith.constant 0 : index
    %12 = vector.load %arg4[%c0_7, %c0_8, %c0_9, %c0_10] : memref<1x1x1x1xf32, #tpu.memory_space<vmem>>, vector<1x1x1x1xf32>
    tpu.vector_store %arg4[%c0_7, %c0_8, %c0_9, %c0_10], %11 {strides = array<i32>} : memref<1x1x1x1xf32, #tpu.memory_space<vmem>>, vector<1x1x1x1xf32>,
    return
  }
  func.func @transform_0(%arg0: i32, %arg1: i32) -> (i32, i32, i32) {
    %c0_i32 = arith.constant 0 : i32
    %c0_i32_0 = arith.constant 0 : i32
    return %arg0, %c0_i32, %arg1 : i32, i32, i32
  }
  func.func @transform_1(%arg0: i32, %arg1: i32) -> (i32, i32, i32, i32) {
    %c0_i32 = arith.constant 0 : i32
    %c0_i32_0 = arith.constant 0 : i32
    %c0_i32_1 = arith.constant 0 : i32
    return %arg0, %arg1, %c0_i32, %c0_i32_0 : i32, i32, i32, i32
  }
  func.func @transform_2(%arg0: i32, %arg1: i32) -> (i32, i32, i32, i32) {
    %c0_i32 = arith.constant 0 : i32
    %c0_i32_0 = arith.constant 0 : i32
    %c0_i32_1 = arith.constant 0 : i32
    return %arg0, %arg1, %c0_i32, %c0_i32_0 : i32, i32, i32, i32
  }
}

</mosaic_0001>

<llo_original>
// kernel: tpu_custom_call.1
$region0: #{tpu_custom_call.1}
  #allocation0 [shape = 'u32[]', space=smem, size = 0x4, offset = 0x4, fixed_abs, tag = 'smem constant byte address 0x4 - core index']
  #allocation1 [shape = 'u32[144,128]{1,0:T(1,128)}', space=vmem, size = 0x12000, scoped, tag = 'internal scratch']
  %s0 = inlined_call_operand.hbm [shape: f32[2,4,256], index: 0, kind: input, shape index: {}]
  %s1 = inlined_call_operand.vmem [shape: f32[2,1,1,1], index: 1, kind: output, shape index: {0}]
  %s2 = inlined_call_operand.vmem [shape: f32[2,1,1,1], index: 2, kind: output, shape index: {1}]
  %3 = xla_tuple %s1, %s2
  %s4 = sld [smem:[#allocation0]]
  $region49: #{tpu_custom_call.1} parent=0
    _
  %s6 = ssub.s32 1, %s4
  %s7 = scalar_select 0, %s6, %s4
  $region1: #{tpu_custom_call.1} parent=0
    #allocation2 [shape = 'u8[8192]{0}', space=vmem, size = 0x2000, scoped, tag = 'input window, operand 0']
    #allocation3 [shape = 's32[2]{0}', space=sflag, size = 0x8, scoped, tag = 'scoped memory for tpu_custom_call.1']
    %8 = vsyncpa [#allocation3], 0
    %s9 = scalar_lea.sflag [#allocation3], 1
    %10 = vsyncpa %s9, 0
    loop: start=0, step=1, limit=4
    $region2: #{tpu_custom_call.1} parent=1 // loop_pre_header
      _
    $region3: #{tpu_custom_call.1} parent=1 // loop_header
      %s12 = sphi 0, %s16
      %p13 = scmp.ge.s32.totalorder %s12, 4
      %s19 = sphi 0, %s31
      %s20 = sphi 0, %s27
      %s21 = sphi 0, %s19
      %s22 = sphi 0, %s20
      %s23 = sphi 0, %s21
      %s24 = sphi 0, %s22
      %s36 = sphi 0, %s38
      %s39 = sphi 0, %s36
      %s40 = sphi 0, %s39
      %s56 = sphi 0, %s40
      %s64 = sphi 0, %s66
      %s67 = sphi 0, %s64
      %s68 = sphi 0, %s67
      %s84 = sphi 0, %s68
      %s92 = sphi 0, %s94
      %s95 = sphi 0, %s92
      %s96 = sphi 0, %s95
      %s112 = sphi 0, %s96
    $region4: #{tpu_custom_call.1} parent=1 // loop_header_branch
      %15 = sbr.rel (%p13) target = $region8
    $region5: #{tpu_custom_call.1} parent=1 // loop_body
      %s17 = ssub.s32 %s12, 1
      %s18 = ssub.s32 %s12, 2
      %s25 = sadd.s32 1, %s20
      %p26 = scmp.ge.s32.totalorder %s25, 1
      %s27 = scalar_select %p26, 0, %s25
      %s28 = sadd.s32 1, %s19
      %s29 = scalar_select %p26, %s28, %s19
      %p30 = scmp.ge.s32.totalorder %s29, 2
      %s31 = scalar_select %p30, 0, %s29
      %s32 = ssub.s32 %s19, %s31
      %s33 = ssub.s32 %s20, %s27
      %s34 = sor.u32 %s32, %s33
      %p35 = scmp.eq.s32.totalorder %s34, 0
      %s37 = sadd.s32 %s36, 1
      %s38 = scalar_select %p35, %s36, %s37
      %p41 = pneg %p35
      %p42 = scmp.eq.s32.totalorder %s12, 1
      %p43 = por %p41, %p42
      %p44 = scmp.ne.s32.totalorder %s36, %s39
      %p45 = scmp.eq.s32.totalorder %s12, 0
      %p46 = por %p44, %p45
      %p47 = scmp.ne.s32.totalorder %s36, %s39
      %p48 = scmp.eq.s32.totalorder %s17, 1
      %p49 = por %p47, %p48
      %p50 = scmp.ne.s32.totalorder %s39, %s40
      %p51 = scmp.eq.s32.totalorder %s17, 0
      %p52 = por %p50, %p51
      %p53 = scmp.ne.s32.totalorder %s39, %s40
      %p54 = scmp.eq.s32.totalorder %s18, 1
      %p55 = por %p53, %p54
      %p57 = scmp.ne.s32.totalorder %s40, %s56
      %p58 = scmp.eq.s32.totalorder %s18, 0
      %p59 = por %p57, %p58
      %s60 = ssub.s32 %s19, %s31
      %s61 = ssub.s32 %s20, %s27
      %s62 = sor.u32 %s60, %s61
      %p63 = scmp.eq.s32.totalorder %s62, 0
      %s65 = sadd.s32 %s64, 1
      %s66 = scalar_select %p63, %s64, %s65
      %p69 = pneg %p63
      %p70 = scmp.eq.s32.totalorder %s12, 1
      %p71 = por %p69, %p70
      %p72 = scmp.ne.s32.totalorder %s64, %s67
      %p73 = scmp.eq.s32.totalorder %s12, 0
      %p74 = por %p72, %p73
      %p75 = scmp.ne.s32.totalorder %s64, %s67
      %p76 = scmp.eq.s32.totalorder %s17, 1
      %p77 = por %p75, %p76
      %p78 = scmp.ne.s32.totalorder %s67, %s68
      %p79 = scmp.eq.s32.totalorder %s17, 0
      %p80 = por %p78, %p79
      %p81 = scmp.ne.s32.totalorder %s67, %s68
      %p82 = scmp.eq.s32.totalorder %s18, 1
      %p83 = por %p81, %p82
      %p85 = scmp.ne.s32.totalorder %s68, %s84
      %p86 = scmp.eq.s32.totalorder %s18, 0
      %p87 = por %p85, %p86
      %s88 = ssub.s32 %s19, %s31
      %s89 = ssub.s32 %s20, %s27
      %s90 = sor.u32 %s88, %s89
      %p91 = scmp.eq.s32.totalorder %s90, 0
      %s93 = sadd.s32 %s92, 1
      %s94 = scalar_select %p91, %s92, %s93
      %p97 = pneg %p91
      %p98 = scmp.eq.s32.totalorder %s12, 1
      %p99 = por %p97, %p98
      %p100 = scmp.ne.s32.totalorder %s92, %s95
      %p101 = scmp.eq.s32.totalorder %s12, 0
      %p102 = por %p100, %p101
      %p103 = scmp.ne.s32.totalorder %s92, %s95
      %p104 = scmp.eq.s32.totalorder %s17, 1
      %p105 = por %p103, %p104
      %p106 = scmp.ne.s32.totalorder %s95, %s96
      %p107 = scmp.eq.s32.totalorder %s17, 0
      %p108 = por %p106, %p107
      %p109 = scmp.ne.s32.totalorder %s95, %s96
      %p110 = scmp.eq.s32.totalorder %s18, 1
      %p111 = por %p109, %p110
      %p113 = scmp.ne.s32.totalorder %s96, %s112
      %p114 = scmp.eq.s32.totalorder %s18, 0
      %p115 = por %p113, %p114
      %p116 = scmp.le.s32.totalorder 1, %s12
      %p117 = scmp.lt.s32.totalorder %s12, 3
      %p118 = pnand %p116, %p117
      %p119 = pneg %p118
      // Predicated region
      $region9: #{tpu_custom_call.1} parent=5 // pred_check
        _
      $region10: #{tpu_custom_call.1} parent=5 // pred_check_branch
        %121 = sbr.rel (%p118) target = $region12
      $region11: #{tpu_custom_call.1} parent=5 // pred_region
        %s122 = ssub.s32 %s12, 1
      $region12: #{tpu_custom_call.1} parent=5 // pred_fallthru
        _
      %p123 = scmp.lt.s32.totalorder %s12, 2
      // Predicated region
      $region13: #{tpu_custom_call.1} parent=5 // pred_check
        %p124 = pneg %p123
      $region14: #{tpu_custom_call.1} parent=5 // pred_check_branch
        %126 = sbr.rel (%p124) target = $region16
      $region15: #{tpu_custom_call.1} parent=5 // pred_region
        // Predicated region
        $region17: #{tpu_custom_call.1} parent=15 // pred_check
          %p127 = pneg %p46
        $region18: #{tpu_custom_call.1} parent=15 // pred_check_branch
          %129 = sbr.rel (%p127) target = $region20
        $region19: #{tpu_custom_call.1} parent=15 // pred_region
          %s130 = sand.u32 %s36, 1
          %s131 = scalar_lea.sflag [#allocation3], %s130
          %s132 = sand.u32 %s36, 1
          %s133 = smul.addr %s132, 8
          %s134 = scalar_lea.vmem [#allocation2], %s133
          %s135 = smul.u32 2, %s20
          %s137 = ssub.s32 128, 128
          %138 = vsyncadd %s131, %s137
          %s139 = smul.addr %s19, 2
          %s140 = sadd.s32 %s135, %s139
          %s141 = smul.addr %s140, 64
          %s142 = scalar_lea.hbm %s0, %s141
          %s144 = sshll.u32 %s134, 4
          %s145 = int_to_ptr.vmem [resolvable:$true] %s144
          %147 = dma.hbm_to_vmem [thread:$0]  %s142, 128, %s145, %s131
        $region20: #{tpu_custom_call.1} parent=15 // pred_fallthru
          _
      $region16: #{tpu_custom_call.1} parent=5 // pred_fallthru
        _
      %p148 = scmp.le.s32.totalorder 1, %s12
      %p149 = scmp.lt.s32.totalorder %s12, 3
      %p150 = pnand %p148, %p149
      %p151 = pneg %p150
      // Predicated region
      $region21: #{tpu_custom_call.1} parent=5 // pred_check
        _
      $region22: #{tpu_custom_call.1} parent=5 // pred_check_branch
        %153 = sbr.rel (%p150) target = $region24
      $region23: #{tpu_custom_call.1} parent=5 // pred_region
        %s154 = ssub.s32 %s12, 1
        %s155 = sand.u32 %s39, 1
        %s156 = scalar_lea.sflag [#allocation3], %s155
        %s157 = sand.u32 %s39, 1
        %s158 = smul.addr %s157, 8
        %s159 = scalar_lea.vmem [#allocation2], %s158
        // Predicated region
        $region25: #{tpu_custom_call.1} parent=23 // pred_check
          %p160 = pneg %p52
        $region26: #{tpu_custom_call.1} parent=23 // pred_check_branch
          %162 = sbr.rel (%p160) target = $region28
        $region27: #{tpu_custom_call.1} parent=23 // pred_region
          %163 = dma.done %s156, 128
        $region28: #{tpu_custom_call.1} parent=23 // pred_fallthru
          _
        %s164 = sand.u32 %s39, 1
        %s165 = scalar_lea.sflag [#allocation3], %s164
        %s166 = sand.u32 %s39, 1
        %s167 = smul.addr %s166, 8
        %s168 = scalar_lea.vmem [#allocation2], %s167
        %p169 = pneg %p52
        %p170 = pneg %p49
        %p171 = pneg %p80
        %p172 = pneg %p77
        %p173 = scmp.lt.s32.totalorder %s21, 1
        %s174 = scalar_select %p173, %s21, 1
        %p175 = scmp.lt.s32.totalorder %s22, 0
        %s176 = scalar_select %p175, %s22, 0
        %s177 = sadd.s32 %s176, %s174
        %s178 = scalar_lea.vmem %s1, %s177
        %p179 = pneg %p108
        %p180 = pneg %p105
        %p181 = scmp.lt.s32.totalorder %s21, 1
        %s182 = scalar_select %p181, %s21, 1
        %p183 = scmp.lt.s32.totalorder %s22, 0
        %s184 = scalar_select %p183, %s22, 0
        %s185 = sadd.s32 %s184, %s182
        %s186 = scalar_lea.vmem %s2, %s185
        %s187 = smul.u32 2, %s22
        %p188 = scmp.lt.s32.totalorder %s21, 1
        %s189 = scalar_select %p188, %s21, 1
        %p190 = scmp.lt.s32.totalorder %s22, 0
        %s191 = scalar_select %p190, %s22, 0
        %s192 = sadd.s32 %s191, %s189
        %s193 = scalar_lea.vmem %s1, %s192
        %p194 = scmp.lt.s32.totalorder %s21, 1
        %s195 = scalar_select %p194, %s21, 1
        %p196 = scmp.lt.s32.totalorder %s22, 0
        %s197 = scalar_select %p196, %s22, 0
        %s198 = sadd.s32 %s197, %s195
        %s199 = scalar_lea.vmem %s2, %s198
        %v200 = vld [vmem:[%s159] sm:$0xff]
        %v202 = vcombine.high %v200, %v200
        %vm204 = vcmask 1043456
        %v205 = vsel %vm204, %v200, inf
        %v206 = vsel %vm204, %v202, inf
        %v207 = vmin.f32 %v205, %v206
        %208 = vmin.xlane.f32.xlu0 %v207
        %v209 = vpop.xlane.xlu0 %208
        %v210 = vrot.slane %v209, 4
        %v211 = vmin.f32 %v209, %v210
        %v212 = vrot.slane %v211, 2
        %v213 = vmin.f32 %v211, %v212
        %v214 = vrot.slane %v213, 1
        %v215 = vmin.f32 %v213, %v214
        %s216 = vtos %v215
        %v217 = vstv %s216
        %vm218 = vcmask 0
        %219 = vst.msk [vmem:[%s193] sm:$0x1] %vm218, %v217
        %v220 = vsel %vm204, %v200, -inf
        %v221 = vsel %vm204, %v202, -inf
        %v222 = vmax.f32 %v220, %v221
        %223 = vmax.xlane.f32.xlu0 %v222
        %v224 = vpop.xlane.xlu0 %223
        %v225 = vrot.slane %v224, 4
        %v226 = vmax.f32 %v224, %v225
        %v227 = vrot.slane %v226, 2
        %v228 = vmax.f32 %v226, %v227
        %v229 = vrot.slane %v228, 1
        %v230 = vmax.f32 %v228, %v229
        %s231 = vtos %v230
        %v232 = vstv %s231
        %233 = vst.msk [vmem:[%s199] sm:$0x1] %vm218, %v232
        %p234 = scmp.lt.s32.totalorder %s21, 1
        %s235 = scalar_select %p234, %s21, 1
        %p236 = scmp.lt.s32.totalorder %s22, 0
        %s237 = scalar_select %p236, %s22, 0
        %s238 = sadd.s32 %s237, %s235
        %s239 = scalar_lea.vmem %s1, %s238
        %p240 = scmp.lt.s32.totalorder %s21, 1
        %s241 = scalar_select %p240, %s21, 1
        %p242 = scmp.lt.s32.totalorder %s22, 0
        %s243 = scalar_select %p242, %s22, 0
        %s244 = sadd.s32 %s243, %s241
        %s245 = scalar_lea.vmem %s2, %s244
        // Predicated region
        $region29: #{tpu_custom_call.1} parent=23 // pred_check
          %p246 = pneg %p77
        $region30: #{tpu_custom_call.1} parent=23 // pred_check_branch
          %248 = sbr.rel (%p246) target = $region32
        $region31: #{tpu_custom_call.1} parent=23 // pred_region
          _
        $region32: #{tpu_custom_call.1} parent=23 // pred_fallthru
          _
        // Predicated region
        $region33: #{tpu_custom_call.1} parent=23 // pred_check
          %p249 = pneg %p105
        $region34: #{tpu_custom_call.1} parent=23 // pred_check_branch
          %251 = sbr.rel (%p249) target = $region36
        $region35: #{tpu_custom_call.1} parent=23 // pred_region
          _
        $region36: #{tpu_custom_call.1} parent=23 // pred_fallthru
          _
      $region24: #{tpu_custom_call.1} parent=5 // pred_fallthru
        _
      %p252 = scmp.le.s32.totalorder 2, %s12
      // Predicated region
      $region37: #{tpu_custom_call.1} parent=5 // pred_check
        %p253 = pneg %p252
      $region38: #{tpu_custom_call.1} parent=5 // pred_check_branch
        %255 = sbr.rel (%p253) target = $region40
      $region39: #{tpu_custom_call.1} parent=5 // pred_region
        %s256 = ssub.s32 %s12, 2
        // Predicated region
        $region41: #{tpu_custom_call.1} parent=39 // pred_check
          %p257 = pneg %p83
        $region42: #{tpu_custom_call.1} parent=39 // pred_check_branch
          %259 = sbr.rel (%p257) target = $region44
        $region43: #{tpu_custom_call.1} parent=39 // pred_region
          %p260 = scmp.lt.s32.totalorder %s23, 1
          %s261 = scalar_select %p260, %s23, 1
          %p262 = scmp.lt.s32.totalorder %s24, 0
          %s263 = scalar_select %p262, %s24, 0
          %s264 = sadd.s32 %s263, %s261
          %s265 = scalar_lea.vmem %s1, %s264
        $region44: #{tpu_custom_call.1} parent=39 // pred_fallthru
          _
        // Predicated region
        $region45: #{tpu_custom_call.1} parent=39 // pred_check
          %p266 = pneg %p111
        $region46: #{tpu_custom_call.1} parent=39 // pred_check_branch
          %268 = sbr.rel (%p266) target = $region48
        $region47: #{tpu_custom_call.1} parent=39 // pred_region
          %p269 = scmp.lt.s32.totalorder %s23, 1
          %s270 = scalar_select %p269, %s23, 1
          %p271 = scmp.lt.s32.totalorder %s24, 0
          %s272 = scalar_select %p271, %s24, 0
          %s273 = sadd.s32 %s272, %s270
          %s274 = scalar_lea.vmem %s2, %s273
        $region48: #{tpu_custom_call.1} parent=39 // pred_fallthru
          _
      $region40: #{tpu_custom_call.1} parent=5 // pred_fallthru
        _
    $region6: #{tpu_custom_call.1} parent=1 // loop_footer
      %s16 = sadd.s32 1, %s12
    $region7: #{tpu_custom_call.1} parent=1 // loop_footer_branch
      %11 = sbr.rel target = $region3
    $region8: #{tpu_custom_call.1} parent=1 // loop_exit
      _
    %275 = vsyncpa [#allocation3], 1
    %s276 = scalar_lea.sflag [#allocation3], 1
    %277 = vsyncpa %s276, 1

</llo_original>
